<compile_context>
chip_gen: v7x
topology: tpu7x:2x2x1
jax: 0.10.0
libtpu: 0.0.40
codegen_flags: <defaults>
</compile_context>

<pallas_src>
import math

import jax
import jax.numpy as jnp
from jax.experimental import pallas as pl
from jax.experimental.pallas import tpu as pltpu


# ------------------------------- small helpers -------------------------------
def _round_up(n, m):
    return ((n + m - 1) // m) * m


def _row_tile(n, max_tile=512):
    # Single block when small (block dim == full dim is always legal); otherwise a
    # sublane-aligned tile; Pallas masks the ragged edge block.
    return n if n <= max_tile else max_tile


def _compiler_params(semantics, blocks):
    """CompilerParams with a VMEM limit derived from the actual block sizes."""
    need = sum(2 * math.prod(shape) * jnp.dtype(dtype).itemsize   # double-buffered
               for shape, dtype in blocks)
    limit = int(min(64 * 2**20, max(32 * 2**20, 2 * need)))
    return pltpu.CompilerParams(dimension_semantics=semantics,
                                vmem_limit_bytes=limit)


# ----------------------------- normalization kernel -------------------------
def _norm_kernel(x_ref, o_ref):
    # Per-batch normalization over (time, feat); matches torch mean(dim=(1,2)) and
    # unbiased std(dim=(1,2)) + 1e-8.
    x = x_ref[...]                                  # (1, T, D)
    n = x.shape[1] * x.shape[2]
    mean = jnp.mean(x)
    var = jnp.sum((x - mean) ** 2) / (n - 1)        # unbiased, like torch.std
    std = jnp.sqrt(var) + 1e-8
    o_ref[...] = (x - mean) / std


def normalize_features(x):
    # TODO(synk): for very long utterances, tile over time (two-pass sum/sumsq) so the
    # (1, T, D) block stays within v7x's smaller VMEM.
    B, T, D = x.shape
    return pl.pallas_call(
        _norm_kernel,
        out_shape=jax.ShapeDtypeStruct((B, T, D), jnp.float32),
        grid=(B,),
        in_specs=[pl.BlockSpec((1, T, D), lambda b: (b, 0, 0))],
        out_specs=pl.BlockSpec((1, T, D), lambda b: (b, 0, 0)),
        compiler_params=_compiler_params(
            ("parallel",), [((1, T, D), jnp.float32)] * 2),
    )(x)


# ------------------- input projection (all timesteps at once) ----------------
def _inproj_first_kernel(x_ref, wfT_ref, wbT_ref, bf_ref, bb_ref, gf_ref, gb_ref):
    x = x_ref[...].astype(wfT_ref.dtype)
    gf_ref[...] = (jnp.dot(x, wfT_ref[...], preferred_element_type=jnp.float32)
                   + bf_ref[...])
    gb_ref[...] = (jnp.dot(x, wbT_ref[...], preferred_element_type=jnp.float32)
                   + bb_ref[...])


def input_projection_first(x_tm, layer, *, max_tile=512):
    """gates_x for layer 0 (fwd & bwd) as one big row-tiled matmul."""
    T, B, Din = x_tm.shape
    H4 = layer["wxT_f"].shape[1]
    n = T * B
    x2 = x_tm.reshape(n, Din)                       # free reshape (time-major contiguous)
    tr = _row_tile(n, max_tile)
    wdt = layer["wxT_f"].dtype
    gf, gb = pl.pallas_call(
        _inproj_first_kernel,
        out_shape=(jax.ShapeDtypeStruct((n, H4), jnp.float32),
                   jax.ShapeDtypeStruct((n, H4), jnp.float32)),
        grid=(pl.cdiv(n, tr),),
        in_specs=[pl.BlockSpec((tr, Din), lambda i: (i, 0)),
                  pl.BlockSpec((Din, H4), lambda i: (0, 0)),
                  pl.BlockSpec((Din, H4), lambda i: (0, 0)),
                  pl.BlockSpec((1, H4), lambda i: (0, 0)),
                  pl.BlockSpec((1, H4), lambda i: (0, 0))],
        out_specs=(pl.BlockSpec((tr, H4), lambda i: (i, 0)),
                   pl.BlockSpec((tr, H4), lambda i: (i, 0))),
        compiler_params=_compiler_params(
            ("parallel",),
            [((tr, Din), jnp.float32), ((Din, H4), wdt), ((Din, H4), wdt),
             ((1, H4), jnp.float32), ((1, H4), jnp.float32),
             ((tr, H4), jnp.float32), ((tr, H4), jnp.float32)]),
    )(x2, layer["wxT_f"], layer["wxT_b"], layer["b_f"], layer["b_b"])
    return gf.reshape(T, B, H4), gb.reshape(T, B, H4)


def _inproj_deep_kernel(af_ref, ab_ref, wffT_ref, wfbT_ref, wbfT_ref, wbbT_ref,
                        bf_ref, bb_ref, gf_ref, gb_ref):
    af = af_ref[...].astype(wffT_ref.dtype)
    ab = ab_ref[...].astype(wffT_ref.dtype)
    gf_ref[...] = (jnp.dot(af, wffT_ref[...], preferred_element_type=jnp.float32)
                   + jnp.dot(ab, wfbT_ref[...], preferred_element_type=jnp.float32)
                   + bf_ref[...])
    gb_ref[...] = (jnp.dot(af, wbfT_ref[...], preferred_element_type=jnp.float32)
                   + jnp.dot(ab, wbbT_ref[...], preferred_element_type=jnp.float32)
                   + bb_ref[...])


def input_projection_deep(act_f, act_b, layer, *, max_tile=512):
    """gates_x for layers >= 1: consumes fwd/bwd halves separately (no concat)."""
    T, B, H = act_f.shape
    H4 = layer["whhT_f"].shape[1]
    n = T * B
    af = act_f.reshape(n, H)
    ab = act_b.reshape(n, H)
    tr = _row_tile(n, max_tile)
    wdt = layer["wxT_ff"].dtype
    gf, gb = pl.pallas_call(
        _inproj_deep_kernel,
        out_shape=(jax.ShapeDtypeStruct((n, H4), jnp.float32),
                   jax.ShapeDtypeStruct((n, H4), jnp.float32)),
        grid=(pl.cdiv(n, tr),),
        in_specs=[pl.BlockSpec((tr, H), lambda i: (i, 0)),
                  pl.BlockSpec((tr, H), lambda i: (i, 0)),
                  pl.BlockSpec((H, H4), lambda i: (0, 0)),
                  pl.BlockSpec((H, H4), lambda i: (0, 0)),
                  pl.BlockSpec((H, H4), lambda i: (0, 0)),
                  pl.BlockSpec((H, H4), lambda i: (0, 0)),
                  pl.BlockSpec((1, H4), lambda i: (0, 0)),
                  pl.BlockSpec((1, H4), lambda i: (0, 0))],
        out_specs=(pl.BlockSpec((tr, H4), lambda i: (i, 0)),
                   pl.BlockSpec((tr, H4), lambda i: (i, 0))),
        compiler_params=_compiler_params(
            ("parallel",),
            [((tr, H), jnp.float32)] * 2 + [((H, H4), wdt)] * 4
            + [((1, H4), jnp.float32)] * 2 + [((tr, H4), jnp.float32)] * 2),
    )(af, ab,
      layer["wxT_ff"], layer["wxT_fb"], layer["wxT_bf"], layer["wxT_bb"],
      layer["b_f"], layer["b_b"])
    return gf.reshape(T, B, H4), gb.reshape(T, B, H4)


# ------------------- fused bidirectional LSTM recurrence ----------------------
def _bilstm_step_kernel(mf_ref, mb_ref, gxf_ref, gxb_ref, whhf_ref, whhb_ref,
                        of_ref, ob_ref, hf, cf, hb, cb):
    t = pl.program_id(0)

    @pl.when(t == 0)
    def _():
        hf[...] = jnp.zeros_like(hf)
        cf[...] = jnp.zeros_like(cf)
        hb[...] = jnp.zeros_like(hb)
        cb[...] = jnp.zeros_like(cb)

    H = hf.shape[1]

    def step(gx, m, h_ref, c_ref, whhT_ref):
        h = h_ref[...]
        c = c_ref[...]
        gates = gx + jnp.dot(h.astype(whhT_ref.dtype), whhT_ref[...],
                             preferred_element_type=jnp.float32)   # (B, 4H)
        i_g = jax.nn.sigmoid(gates[:, 0 * H:1 * H])
        f_g = jax.nn.sigmoid(gates[:, 1 * H:2 * H])
        g_g = jnp.tanh(gates[:, 2 * H:3 * H])
        o_g = jax.nn.sigmoid(gates[:, 3 * H:4 * H])
        c_new = f_g * c + i_g * g_g
        h_new = o_g * jnp.tanh(c_new)
        valid = m > 0.5                         # (B, 1) bool; packed-seq semantics
        h_ref[...] = jnp.where(valid, h_new, h)
        c_ref[...] = jnp.where(valid, c_new, c)
        return jnp.where(valid, h_new, 0.0)     # zero outputs at padded steps

    # Two independent dependence chains per grid step (fwd @ t, bwd @ T-1-t):
    # interleaving them hides the per-step MXU/EUP latency on single-TC chips.
    of_ref[0] = step(gxf_ref[0], mf_ref[0], hf, cf, whhf_ref)
    ob_ref[0] = step(gxb_ref[0], mb_ref[0], hb, cb, whhb_ref)


def bilstm_layer(gx_f, gx_b, mask_tm, layer):
    # TODO(synk): on v7x the two directions could instead run on separate TensorCores
    # via pl.core_map over a 2-core mesh for ~2x on the recurrence.
    T, B, H4 = gx_f.shape
    H = H4 // 4
    wdt = layer["whhT_f"].dtype
    out_f, out_b = pl.pallas_call(
        _bilstm_step_kernel,
        out_shape=(jax.ShapeDtypeStruct((T, B, H), jnp.float32),
                   jax.ShapeDtypeStruct((T, B, H), jnp.float32)),
        grid=(T,),
        in_specs=[pl.BlockSpec((1, B, 1), lambda t: (t, 0, 0)),           # mask fwd
                  pl.BlockSpec((1, B, 1), lambda t: (T - 1 - t, 0, 0)),   # mask bwd
                  pl.BlockSpec((1, B, H4), lambda t: (t, 0, 0)),          # gates_x fwd
                  pl.BlockSpec((1, B, H4), lambda t: (T - 1 - t, 0, 0)),  # gates_x bwd
                  pl.BlockSpec((H, H4), lambda t: (0, 0)),                # W_hh^T fwd (resident)
                  pl.BlockSpec((H, H4), lambda t: (0, 0))],               # W_hh^T bwd (resident)
        out_specs=(pl.BlockSpec((1, B, H), lambda t: (t, 0, 0)),
                   pl.BlockSpec((1, B, H), lambda t: (T - 1 - t, 0, 0))),
        scratch_shapes=[pltpu.VMEM((B, H), jnp.float32) for _ in range(4)],  # h_f,c_f,h_b,c_b
        compiler_params=_compiler_params(
            ("arbitrary",),
            [((1, B, 1), jnp.float32)] * 2 + [((1, B, H4), jnp.float32)] * 2
            + [((H, H4), wdt)] * 2 + [((1, B, H), jnp.float32)] * 2),
    )(mask_tm, mask_tm, gx_f, gx_b, layer["whhT_f"], layer["whhT_b"])
    return out_f, out_b


# -------------------------- FC + log_softmax kernel --------------------------
def _fc_logsoftmax_kernel(af_ref, ab_ref, wfT_ref, wbT_ref, b_ref, o_ref):
    af = af_ref[...].astype(wfT_ref.dtype)
    ab = ab_ref[...].astype(wbT_ref.dtype)
    logits = (jnp.dot(af, wfT_ref[...], preferred_element_type=jnp.float32)
              + jnp.dot(ab, wbT_ref[...], preferred_element_type=jnp.float32)
              + b_ref[...])                                       # (tr, O_pad)
    m = jnp.max(logits, axis=-1, keepdims=True)
    lse = jnp.log(jnp.sum(jnp.exp(logits - m), axis=-1, keepdims=True)) + m
    o_ref[...] = logits - lse


def fc_log_softmax(act_f, act_b, fc, output_dim, *, max_tile=512):
    T, B, H = act_f.shape
    n = T * B
    O_pad = fc["wT_f"].shape[1]
    af = act_f.reshape(n, H)
    ab = act_b.reshape(n, H)
    tr = _row_tile(n, max_tile)
    wdt = fc["wT_f"].dtype
    out = pl.pallas_call(
        _fc_logsoftmax_kernel,
        out_shape=jax.ShapeDtypeStruct((n, O_pad), jnp.float32),
        grid=(pl.cdiv(n, tr),),
        in_specs=[pl.BlockSpec((tr, H), lambda i: (i, 0)),
                  pl.BlockSpec((tr, H), lambda i: (i, 0)),
                  pl.BlockSpec((H, O_pad), lambda i: (0, 0)),
                  pl.BlockSpec((H, O_pad), lambda i: (0, 0)),
                  pl.BlockSpec((1, O_pad), lambda i: (0, 0))],
        out_specs=pl.BlockSpec((tr, O_pad), lambda i: (i, 0)),
        compiler_params=_compiler_params(
            ("parallel",),
            [((tr, H), jnp.float32)] * 2 + [((H, O_pad), wdt)] * 2
            + [((1, O_pad), jnp.float32), ((tr, O_pad), jnp.float32)]),
    )(af, ab, fc["wT_f"], fc["wT_b"], fc["b"])
    # Drop the padded (-inf-biased) classes; back to time-major (T, B, O).
    return out[:, :output_dim].reshape(T, B, output_dim)


# ------------------------------- model wrapper -------------------------------
def ctc_rnn_forward(params, x, x_lens, *, input_dim, output_dim, normalize=True):
    B, T, D = x.shape
    if D != input_dim:
        if D > input_dim:
            x = x[:, :, :input_dim]
        else:
            x = jnp.concatenate(
                [x, jnp.zeros((B, T, input_dim - D), x.dtype)], axis=2)
    if normalize:
        x = normalize_features(x)

    # validity mask for packed-sequence emulation, time-major (T, B, 1)
    t_idx = jnp.arange(T)[:, None]
    mask_tm = (t_idx < x_lens[None, :]).astype(jnp.float32)[:, :, None]

    # single small transpose to time-major; all large activations stay time-major.
    x_tm = jnp.transpose(x, (1, 0, 2))                  # (T, B, Din)

    act_f = act_b = None
    for li, layer in enumerate(params["lstm"]):
        if li == 0:
            gx_f, gx_b = input_projection_first(x_tm, layer)
        else:
            gx_f, gx_b = input_projection_deep(act_f, act_b, layer)
        act_f, act_b = bilstm_layer(gx_f, gx_b, mask_tm, layer)
        # TODO(synk): inter-layer / output dropout omitted (eval-mode forward).

    logp_tm = fc_log_softmax(act_f, act_b, params["fc"], output_dim)  # (T, B, O)
    log_probs = jnp.transpose(logp_tm, (1, 0, 2))                     # (B, T, O)
    return log_probs, x_lens


# ------------------------------ parameter init --------------------------------
def init_params(key, input_dim, hidden_dim, output_dim, num_layers=2,
                matmul_dtype=jnp.bfloat16):
    """PyTorch-equivalent init, stored pre-transposed / pre-split / pre-padded for
    the kernels (no per-call transposes); matmul weights in bf16, biases f32."""
    def xavier(k, shape):
        fan_out, fan_in = shape
        limit = (6.0 / (fan_in + fan_out)) ** 0.5
        return jax.random.uniform(k, shape, jnp.float32, -limit, limit)

    def orthogonal(k, shape):
        a = jax.random.normal(k, shape, jnp.float32)
        q, _ = jnp.linalg.qr(a)            # rows >= cols -> orthonormal columns
        return q.astype(jnp.float32)

    H = hidden_dim
    H4 = 4 * H
    layers = []
    keys = jax.random.split(key, num_layers * 4 + 1)
    ki = 0
    for layer_idx in range(num_layers):
        in_dim = input_dim if layer_idx == 0 else 2 * H
        lp = {}
        for d in ("f", "b"):
            w_ih = xavier(keys[ki], (H4, in_dim)); ki += 1
            w_hh = orthogonal(keys[ki], (H4, H)); ki += 1
            w_ihT = jnp.transpose(w_ih).astype(matmul_dtype)         # (in_dim, 4H)
            if layer_idx == 0:
                lp[f"wxT_{d}"] = w_ihT
            else:
                lp[f"wxT_{d}f"] = w_ihT[:H]       # rows multiplying the fwd-half input
                lp[f"wxT_{d}b"] = w_ihT[H:]       # rows multiplying the bwd-half input
            lp[f"whhT_{d}"] = jnp.transpose(w_hh).astype(matmul_dtype)  # (H, 4H)
            lp[f"b_{d}"] = jnp.zeros((1, H4), jnp.float32)   # fused b_ih + b_hh (zeros)
        layers.append(lp)

    O = output_dim
    O_pad = _round_up(O, 128)
    fc_w = xavier(keys[ki], (O, 2 * H))
    fc_wT = jnp.pad(jnp.transpose(fc_w), ((0, 0), (0, O_pad - O)))   # (2H, O_pad)
    fc_b = jnp.concatenate([jnp.zeros((O,), jnp.float32),
                            jnp.full((O_pad - O,), -1e30, jnp.float32)])
    fc = {"wT_f": fc_wT[:H].astype(matmul_dtype),
          "wT_b": fc_wT[H:].astype(matmul_dtype),
          "b": fc_b.reshape(1, O_pad)}
    return {"lstm": layers, "fc": fc}


if __name__ == "__main__":
    key = jax.random.PRNGKey(0)
    B, T = 2, 8
    input_dim, hidden_dim, output_dim = 16, 32, 10

    kp, kx = jax.random.split(key)
    params = init_params(kp, input_dim, hidden_dim, output_dim, num_layers=2)
    x = jax.random.normal(kx, (B, T, input_dim), jnp.float32)
    x_lens = jnp.array([8, 5], dtype=jnp.int32)

    log_probs, out_lens = ctc_rnn_forward(params, x, x_lens,
                                          input_dim=input_dim,
                                          output_dim=output_dim)
    jax.block_until_ready(log_probs)

    assert log_probs.shape == (B, T, output_dim)
    assert out_lens.shape == (B,)
    # log_softmax rows sum to 1 in prob space
    assert bool(jnp.all(jnp.abs(jnp.sum(jnp.exp(log_probs), axis=-1) - 1.0) < 1e-4))
    print("KERNEL_OK")
</pallas_src>

<mosaic_0001>
module attributes {stable_mosaic.version = 11 : i64} {
  func.func @_norm_kernel(%arg0: i32, %arg1: memref<1x8x16xf32, #tpu.memory_space<vmem>>, %arg2: memref<1x8x16xf32, #tpu.memory_space<vmem>>) attributes {dimension_semantics = [#tpu.dimension_semantics<parallel>], iteration_bounds = array<i64: 2>, scalar_prefetch = 0 : i64, scratch_operands = 0 : i64, tpu.core_type = #tpu.core_type<tc>, window_params = [{transform_indices = @transform_0, window_bounds = array<i64: 1, 8, 16>}, {transform_indices = @transform_1, window_bounds = array<i64: 1, 8, 16>}]} {
    %c0 = arith.constant 0 : index
    %c0_0 = arith.constant 0 : index
    %c0_1 = arith.constant 0 : index
    %0 = vector.load %arg1[%c0, %c0_0, %c0_1] : memref<1x8x16xf32, #tpu.memory_space<vmem>>, vector<1x8x16xf32>
    %1 = vector.shape_cast %0 : vector<1x8x16xf32> to vector<1x1x8x16xf32>
    %cst = arith.constant dense<0.000000e+00> : vector<1xf32>
    %2 = vector.multi_reduction <add>, %1, %cst [1, 2, 3] : vector<1x1x8x16xf32> to vector<1xf32>
    %3 = vector.shape_cast %2 : vector<1xf32> to vector<1x1x1x1xf32>
    %4 = vector.extract %3[0, 0, 0, 0] : f32 from vector<1x1x1x1xf32>
    %cst_2 = arith.constant 1.280000e+02 : f32
    %5 = arith.divf %4, %cst_2 : f32
    %6 = vector.broadcast %5 : f32 to vector<1x8x16xf32>
    %7 = arith.subf %0, %6 : vector<1x8x16xf32>
    %8 = arith.mulf %7, %7 : vector<1x8x16xf32>
    %9 = vector.shape_cast %8 : vector<1x8x16xf32> to vector<1x1x8x16xf32>
    %cst_3 = arith.constant dense<0.000000e+00> : vector<1xf32>
    %10 = vector.multi_reduction <add>, %9, %cst_3 [1, 2, 3] : vector<1x1x8x16xf32> to vector<1xf32>
    %11 = vector.shape_cast %10 : vector<1xf32> to vector<1x1x1x1xf32>
    %12 = vector.extract %11[0, 0, 0, 0] : f32 from vector<1x1x1x1xf32>
    %cst_4 = arith.constant 1.270000e+02 : f32
    %13 = arith.divf %12, %cst_4 : f32
    %14 = math.sqrt %13 : f32
    %cst_5 = arith.constant 9.99999993E-9 : f32
    %15 = arith.addf %14, %cst_5 : f32
    %16 = vector.broadcast %5 : f32 to vector<1x8x16xf32>
    %17 = arith.subf %0, %16 : vector<1x8x16xf32>
    %18 = vector.broadcast %15 : f32 to vector<1x8x16xf32>
    %19 = arith.divf %17, %18 : vector<1x8x16xf32>
    %c0_6 = arith.constant 0 : index
    %c0_7 = arith.constant 0 : index
    %c0_8 = arith.constant 0 : index
    %20 = vector.load %arg2[%c0_6, %c0_7, %c0_8] : memref<1x8x16xf32, #tpu.memory_space<vmem>>, vector<1x8x16xf32>
    tpu.vector_store %arg2[%c0_6, %c0_7, %c0_8], %19 {strides = array<i32>} : memref<1x8x16xf32, #tpu.memory_space<vmem>>, vector<1x8x16xf32>,
    return
  }
  func.func @transform_0(%arg0: i32) -> (i32, i32, i32) {
    %c0_i32 = arith.constant 0 : i32
    %c0_i32_0 = arith.constant 0 : i32
    %c0_i32_1 = arith.constant 0 : i32
    return %arg0, %c0_i32, %c0_i32_0 : i32, i32, i32
  }
  func.func @transform_1(%arg0: i32) -> (i32, i32, i32) {
    %c0_i32 = arith.constant 0 : i32
    %c0_i32_0 = arith.constant 0 : i32
    %c0_i32_1 = arith.constant 0 : i32
    return %arg0, %c0_i32, %c0_i32_0 : i32, i32, i32
  }
}

</mosaic_0001>

<llo_original>
// kernel: tpu_custom_call.1
$region0: #{tpu_custom_call.1}
  #allocation0 [shape = 'u32[]', space=smem, size = 0x4, offset = 0x4, fixed_abs, tag = 'smem constant byte address 0x4 - core index']
  #allocation1 [shape = 'u32[144,128]{1,0:T(1,128)}', space=vmem, size = 0x12000, scoped, tag = 'internal scratch']
  %s0 = inlined_call_operand.hbm [shape: f32[2,8,16], index: 0, kind: input, shape index: {}]
  %s1 = inlined_call_operand.hbm [shape: f32[2,8,16], index: 1, kind: output, shape index: {}]
  %s2 = sld [smem:[#allocation0]]
  $region41: #{tpu_custom_call.1} parent=0
    _
  %s4 = ssub.s32 1, %s2
  %s5 = scalar_select 0, %s4, %s2
  $region1: #{tpu_custom_call.1} parent=0
    #allocation2 [shape = 'u8[8192]{0}', space=vmem, size = 0x2000, scoped, tag = 'input window, operand 0']
    #allocation3 [shape = 's32[2]{0}', space=sflag, size = 0x8, scoped, tag = 'scoped memory for tpu_custom_call.1']
    #allocation4 [shape = 's32[2]{0}', space=sflag, size = 0x8, scoped, tag = 'scoped memory for tpu_custom_call.1']
    #allocation5 [shape = 'u8[8192]{0}', space=vmem, size = 0x2000, scoped, tag = 'output window, operand 0']
    %6 = vsyncpa [#allocation3], 0
    %s7 = scalar_lea.sflag [#allocation3], 1
    %8 = vsyncpa %s7, 0
    %9 = vsyncpa [#allocation4], 0
    %s10 = scalar_lea.sflag [#allocation4], 1
    %11 = vsyncpa %s10, 0
    loop: start=0, step=1, limit=4
    $region2: #{tpu_custom_call.1} parent=1 // loop_pre_header
      _
    $region3: #{tpu_custom_call.1} parent=1 // loop_header
      %s13 = sphi 0, %s17
      %p14 = scmp.ge.s32.totalorder %s13, 4
      %s23 = sphi 0, %s25
      %s26 = sphi 0, %s23
      %s27 = sphi 0, %s26
      %s43 = sphi 0, %s27
      %s49 = sphi 0, %s51
      %s52 = sphi 0, %s49
      %s53 = sphi 0, %s52
      %s69 = sphi 0, %s53
    $region4: #{tpu_custom_call.1} parent=1 // loop_header_branch
      %16 = sbr.rel (%p14) target = $region8
    $region5: #{tpu_custom_call.1} parent=1 // loop_body
      %s18 = ssub.s32 %s13, 1
      %s19 = ssub.s32 %s13, 2
      %s20 = sadd.s32 %s13, 1
      %s21 = ssub.s32 %s13, %s20
      %p22 = scmp.eq.s32.totalorder %s21, 0
      %s24 = sadd.s32 %s23, 1
      %s25 = scalar_select %p22, %s23, %s24
      %p28 = pneg %p22
      %p29 = scmp.eq.s32.totalorder %s13, 1
      %p30 = por %p28, %p29
      %p31 = scmp.ne.s32.totalorder %s23, %s26
      %p32 = scmp.eq.s32.totalorder %s13, 0
      %p33 = por %p31, %p32
      %p34 = scmp.ne.s32.totalorder %s23, %s26
      %p35 = scmp.eq.s32.totalorder %s18, 1
      %p36 = por %p34, %p35
      %p37 = scmp.ne.s32.totalorder %s26, %s27
      %p38 = scmp.eq.s32.totalorder %s18, 0
      %p39 = por %p37, %p38
      %p40 = scmp.ne.s32.totalorder %s26, %s27
      %p41 = scmp.eq.s32.totalorder %s19, 1
      %p42 = por %p40, %p41
      %p44 = scmp.ne.s32.totalorder %s27, %s43
      %p45 = scmp.eq.s32.totalorder %s19, 0
      %p46 = por %p44, %p45
      %s47 = ssub.s32 %s13, %s20
      %p48 = scmp.eq.s32.totalorder %s47, 0
      %s50 = sadd.s32 %s49, 1
      %s51 = scalar_select %p48, %s49, %s50
      %p54 = pneg %p48
      %p55 = scmp.eq.s32.totalorder %s13, 1
      %p56 = por %p54, %p55
      %p57 = scmp.ne.s32.totalorder %s49, %s52
      %p58 = scmp.eq.s32.totalorder %s13, 0
      %p59 = por %p57, %p58
      %p60 = scmp.ne.s32.totalorder %s49, %s52
      %p61 = scmp.eq.s32.totalorder %s18, 1
      %p62 = por %p60, %p61
      %p63 = scmp.ne.s32.totalorder %s52, %s53
      %p64 = scmp.eq.s32.totalorder %s18, 0
      %p65 = por %p63, %p64
      %p66 = scmp.ne.s32.totalorder %s52, %s53
      %p67 = scmp.eq.s32.totalorder %s19, 1
      %p68 = por %p66, %p67
      %p70 = scmp.ne.s32.totalorder %s53, %s69
      %p71 = scmp.eq.s32.totalorder %s19, 0
      %p72 = por %p70, %p71
      %p73 = scmp.le.s32.totalorder 1, %s13
      %p74 = scmp.lt.s32.totalorder %s13, 3
      %p75 = pnand %p73, %p74
      %p76 = pneg %p75
      // Predicated region
      $region9: #{tpu_custom_call.1} parent=5 // pred_check
        _
      $region10: #{tpu_custom_call.1} parent=5 // pred_check_branch
        %78 = sbr.rel (%p75) target = $region12
      $region11: #{tpu_custom_call.1} parent=5 // pred_region
        %s79 = ssub.s32 %s13, 1
      $region12: #{tpu_custom_call.1} parent=5 // pred_fallthru
        _
      %p80 = scmp.lt.s32.totalorder %s13, 2
      // Predicated region
      $region13: #{tpu_custom_call.1} parent=5 // pred_check
        %p81 = pneg %p80
      $region14: #{tpu_custom_call.1} parent=5 // pred_check_branch
        %83 = sbr.rel (%p81) target = $region16
      $region15: #{tpu_custom_call.1} parent=5 // pred_region
        // Predicated region
        $region17: #{tpu_custom_call.1} parent=15 // pred_check
          %p84 = pneg %p33
        $region18: #{tpu_custom_call.1} parent=15 // pred_check_branch
          %86 = sbr.rel (%p84) target = $region20
        $region19: #{tpu_custom_call.1} parent=15 // pred_region
          %s87 = sand.u32 %s23, 1
          %s88 = scalar_lea.sflag [#allocation3], %s87
          %s89 = sand.u32 %s23, 1
          %s90 = smul.addr %s89, 8
          %s91 = scalar_lea.vmem [#allocation2], %s90
          %s93 = ssub.s32 128, 128
          %94 = vsyncadd %s88, %s93
          %s95 = smul.addr %s13, 128
          %s96 = scalar_lea.hbm %s0, %s95
          %s98 = sshll.u32 %s91, 4
          %s99 = int_to_ptr.vmem [resolvable:$true] %s98
          %101 = dma.hbm_to_vmem [thread:$0]  %s96, 128, %s99, %s88
        $region20: #{tpu_custom_call.1} parent=15 // pred_fallthru
          _
      $region16: #{tpu_custom_call.1} parent=5 // pred_fallthru
        _
      %p102 = scmp.le.s32.totalorder 1, %s13
      %p103 = scmp.lt.s32.totalorder %s13, 3
      %p104 = pnand %p102, %p103
      %p105 = pneg %p104
      // Predicated region
      $region21: #{tpu_custom_call.1} parent=5 // pred_check
        _
      $region22: #{tpu_custom_call.1} parent=5 // pred_check_branch
        %107 = sbr.rel (%p104) target = $region24
      $region23: #{tpu_custom_call.1} parent=5 // pred_region
        %s108 = ssub.s32 %s13, 1
        %s109 = sand.u32 %s26, 1
        %s110 = scalar_lea.sflag [#allocation3], %s109
        %s111 = sand.u32 %s26, 1
        %s112 = smul.addr %s111, 8
        %s113 = scalar_lea.vmem [#allocation2], %s112
        // Predicated region
        $region25: #{tpu_custom_call.1} parent=23 // pred_check
          %p114 = pneg %p39
        $region26: #{tpu_custom_call.1} parent=23 // pred_check_branch
          %116 = sbr.rel (%p114) target = $region28
        $region27: #{tpu_custom_call.1} parent=23 // pred_region
          %117 = dma.done %s110, 128
        $region28: #{tpu_custom_call.1} parent=23 // pred_fallthru
          _
        %s118 = sand.u32 %s26, 1
        %s119 = scalar_lea.sflag [#allocation3], %s118
        %s120 = sand.u32 %s26, 1
        %s121 = smul.addr %s120, 8
        %s122 = scalar_lea.vmem [#allocation2], %s121
        %p123 = pneg %p39
        %p124 = pneg %p36
        %p125 = pneg %p65
        %p126 = pneg %p62
        %s127 = sand.u32 %s52, 1
        %s128 = scalar_lea.sflag [#allocation4], %s127
        %s129 = sand.u32 %s52, 1
        %s130 = smul.addr %s129, 8
        %s131 = scalar_lea.vmem [#allocation5], %s130
        %v132 = vld [vmem:[%s113] sm:$0xff]
        %vm133 = vcmask 130048
        %v134 = vsel %vm133, %v132, 0.0
        %135 = vadd.xlane.f32.xlu0 %v134
        %v136 = vpop.xlane.xlu0 %135
        %v137 = vrot.slane %v136, 4
        %v138 = vadd.f32 %v136, %v137
        %v139 = vrot.slane %v138, 2
        %v140 = vadd.f32 %v138, %v139
        %v141 = vrot.slane %v140, 1
        %v142 = vadd.f32 %v140, %v141
        %s143 = vtos %v142
        %v144 = vrcp.pop 128.0
        %s145 = vtos %v144
        %s146 = smul.f32 %s143, %s145
        %v147 = vstv %s146
        %v148 = vsub.f32 %v132, %v147
        %v149 = vmul.f32 %v148, %v148
        %v150 = vsel %vm133, %v149, 0.0
        %151 = vadd.xlane.f32.xlu0 %v150
        %v152 = vpop.xlane.xlu0 %151
        %v153 = vrot.slane %v152, 4
        %v154 = vadd.f32 %v152, %v153
        %v155 = vrot.slane %v154, 2
        %v156 = vadd.f32 %v154, %v155
        %v157 = vrot.slane %v156, 1
        %v158 = vadd.f32 %v156, %v157
        %s159 = vtos %v158
        %v160 = vrcp.pop 127.0
        %s161 = vtos %v160
        %s162 = smul.f32 %s159, %s161
        %v163 = vstv %s162
        %v164 = vrsqrt.pop %v163
        %v165 = vmul.f32 %v163, %v164
        %vm166 = vcmp.eq.f32.partialorder %v163, inf
        %v167 = vsel %vm166, %v163, %v165
        %vm168 = vcmp.eq.f32.partialorder %v163, 0.0
        %v169 = vand.u32 %v163, 2147483648
        %v170 = vsel %vm168, %v169, %v167
        %s171 = vtos %v170
        %s172 = sadd.f32 %s171, 1e-08
        %v173 = vstv %s172
        %v174 = vrcp.pop %v173
        %v175 = vmul.f32 %v148, %v174
        %176 = vst.msk [vmem:[%s131] sm:$0xff] %vm133, %v175
        %s177 = sand.u32 %s52, 1
        %s178 = scalar_lea.sflag [#allocation4], %s177
        %s179 = sand.u32 %s52, 1
        %s180 = smul.addr %s179, 8
        %s181 = scalar_lea.vmem [#allocation5], %s180
        // Predicated region
        $region29: #{tpu_custom_call.1} parent=23 // pred_check
          %p182 = pneg %p62
        $region30: #{tpu_custom_call.1} parent=23 // pred_check_branch
          %184 = sbr.rel (%p182) target = $region32
        $region31: #{tpu_custom_call.1} parent=23 // pred_region
          %s186 = ssub.s32 128, 128
          %187 = vsyncadd %s178, %s186
          %s188 = smul.addr %s18, 128
          %s189 = scalar_lea.hbm %s1, %s188
          %s191 = sshll.u32 %s181, 4
          %s192 = int_to_ptr.vmem [resolvable:$true] %s191
          %194 = dma.vmem_to_hbm [thread:$0]  %s192, 128, %s189, %s178
        $region32: #{tpu_custom_call.1} parent=23 // pred_fallthru
          _
      $region24: #{tpu_custom_call.1} parent=5 // pred_fallthru
        _
      %p195 = scmp.le.s32.totalorder 2, %s13
      // Predicated region
      $region33: #{tpu_custom_call.1} parent=5 // pred_check
        %p196 = pneg %p195
      $region34: #{tpu_custom_call.1} parent=5 // pred_check_branch
        %198 = sbr.rel (%p196) target = $region36
      $region35: #{tpu_custom_call.1} parent=5 // pred_region
        %s199 = ssub.s32 %s13, 2
        // Predicated region
        $region37: #{tpu_custom_call.1} parent=35 // pred_check
          %p200 = pneg %p68
        $region38: #{tpu_custom_call.1} parent=35 // pred_check_branch
          %202 = sbr.rel (%p200) target = $region40
        $region39: #{tpu_custom_call.1} parent=35 // pred_region
          %s203 = sand.u32 %s53, 1
          %s204 = scalar_lea.sflag [#allocation4], %s203
          %s205 = sand.u32 %s53, 1
          %s206 = smul.addr %s205, 8
          %s207 = scalar_lea.vmem [#allocation5], %s206
          %208 = dma.done %s204, 128
        $region40: #{tpu_custom_call.1} parent=35 // pred_fallthru
          _
      $region36: #{tpu_custom_call.1} parent=5 // pred_fallthru
        _
    $region6: #{tpu_custom_call.1} parent=1 // loop_footer
      %s17 = sadd.s32 1, %s13
    $region7: #{tpu_custom_call.1} parent=1 // loop_footer_branch
      %12 = sbr.rel target = $region3
    $region8: #{tpu_custom_call.1} parent=1 // loop_exit
      _
    %209 = vsyncpa [#allocation3], 1
    %s210 = scalar_lea.sflag [#allocation3], 1
    %211 = vsyncpa %s210, 1
    %212 = vsyncpa [#allocation4], 1
    %s213 = scalar_lea.sflag [#allocation4], 1
    %214 = vsyncpa %s213, 1

</llo_original>
